<compile_context>
chip_gen: v7x
topology: tpu7x:2x2x1
jax: 0.10.0
libtpu: 0.0.40
codegen_flags: <defaults>
</compile_context>

<pallas_src>
import functools

import jax
import jax.numpy as jnp
from jax import lax
from jax.experimental import pallas as pl
from jax.experimental.pallas import tpu as pltpu


# ---- module hyperparameters (deterministic stand-in for audfilters(...)) ----
NUM_CHANNELS = 16
KERNEL_SIZE = 32
STRIDE = 8
FS = 16000
L = 256
TIME_AVG = KERNEL_SIZE // STRIDE            # 4
TIME_AVG_STRIDE = TIME_AVG // 2             # 2
IS_LOG = False
LOG_EPS = 1e-10


def make_gabor_kernels(num_channels, kernel_size, fs):
    """Deterministic complex Gabor-like analysis filters (synthetic audfilters)."""
    t = jnp.arange(kernel_size, dtype=jnp.float32) - kernel_size // 2
    fc = jnp.linspace(50.0, 0.45 * fs, num_channels, dtype=jnp.float32)
    n = jnp.arange(kernel_size, dtype=jnp.float32)
    win = 0.5 - 0.5 * jnp.cos(2.0 * jnp.pi * n / (kernel_size - 1))
    phase = 2.0 * jnp.pi * fc[:, None] * t[None, :] / fs
    k_real = (win[None, :] * jnp.cos(phase)).astype(jnp.float32)   # (C, K)
    k_imag = (win[None, :] * jnp.sin(phase)).astype(jnp.float32)   # (C, K)
    return k_real, k_imag


def _isac_kernel(xbt_ref, w_ref, out_ref, *, n_batch, n_chan, n_shift, t1_len,
                 t2_len, time_avg, time_avg_stride, is_log):
    # xbt_ref: (B, stride, T0)   padded signal: xbt[b, i, j] = x_pad[b, j*stride + i]
    # w_ref:   (2C, K)           fused weights concat([k_real, k_imag], axis=0)
    # out_ref: (B, C, T2)        final-layout output
    xbt = xbt_ref[...]                                               # (B, stride, T0)

    # In-kernel im2col with batch folded onto the lane axis:
    #   frames[s*stride + i, b*T1 + t] = x_pad[b, t*stride + s*stride + i]
    # Built from static lane slices + lane/sublane concatenations (VPU/XLU, no extra DMA).
    frames = jnp.concatenate(
        [jnp.concatenate([xbt[b, :, s:s + t1_len] for b in range(n_batch)], axis=1)
         for s in range(n_shift)],
        axis=0)                                                      # (K, B*T1)

    # Fused real+imag analytic filterbank: one MXU matmul for all batches.
    ri = jnp.dot(w_ref[...], frames,
                 preferred_element_type=jnp.float32)                 # (2C, B*T1)
    re = ri[:n_chan, :]
    im = ri[n_chan:, :]
    power = re * re + im * im                                        # (C, B*T1)

    # Banded all-ones averaging matrix (grouped avg conv), generated in-kernel.
    t1 = lax.broadcasted_iota(jnp.int32, (t1_len, t2_len), 0)
    t2 = lax.broadcasted_iota(jnp.int32, (t1_len, t2_len), 1) * time_avg_stride
    avg = jnp.logical_and(t1 >= t2, t1 < t2 + time_avg).astype(jnp.float32)  # (T1, T2)

    for b in range(n_batch):                                         # static unroll (B small)
        out_b = jnp.dot(power[:, b * t1_len:(b + 1) * t1_len], avg,
                        preferred_element_type=jnp.float32)          # (C, T2)
        if is_log:
            # NOTE: clamped before log10; torch would produce -inf for zero power.
            out_b = jnp.log10(jnp.maximum(out_b, LOG_EPS))
        out_ref[b] = out_b.astype(out_ref.dtype)


@functools.partial(
    jax.jit,
    static_argnames=("stride", "time_avg", "time_avg_stride", "is_log"))
def isac_mel_spectrogram(x, w, *, stride=STRIDE, time_avg=TIME_AVG,
                         time_avg_stride=TIME_AVG_STRIDE, is_log=IS_LOG):
    """x: (B, 1, L) signal; w: (2C, K) prebuilt concat([k_real, k_imag]) weights."""
    B, c_in, Lx = x.shape
    assert c_in == 1
    C2, K = w.shape
    C = C2 // 2
    pad = K // 2

    # --- jitted glue (fuses into one tiny copy op): circular pad + strided layout ---
    xp = jnp.pad(x[:, 0, :], ((0, 0), (pad, pad)), mode="wrap")      # (B, Lp)
    Lp = Lx + 2 * pad
    T1 = (Lp - K) // stride + 1
    T2 = (T1 - time_avg) // time_avg_stride + 1

    # prerequisites for the in-kernel strided im2col (generality restriction vs torch module)
    assert Lp % stride == 0 and K % stride == 0
    T0 = Lp // stride
    R = K // stride
    assert T1 + R - 1 == T0

    # (B, Lp) -> (B, stride, T0): xbt[b, i, j] = xp[b, j*stride + i]
    xbt = jnp.transpose(xp.reshape(B, T0, stride), (0, 2, 1))

    kernel = functools.partial(
        _isac_kernel, n_batch=B, n_chan=C, n_shift=R, t1_len=T1, t2_len=T2,
        time_avg=time_avg, time_avg_stride=time_avg_stride, is_log=is_log)

    # Single kernel invocation (no grid): whole problem fits trivially in VMEM (<~30 KB),
    # so one step avoids all per-grid-step pipeline overhead.
    return pl.pallas_call(
        kernel,
        out_shape=jax.ShapeDtypeStruct((B, C, T2), jnp.float32),
        in_specs=[
            pl.BlockSpec(memory_space=pltpu.MemorySpace.VMEM),       # padded signal
            pl.BlockSpec(memory_space=pltpu.MemorySpace.VMEM),       # fused weights
        ],
        out_specs=pl.BlockSpec(memory_space=pltpu.MemorySpace.VMEM),
    )(xbt, w)


def isac_reference(x, k_real, k_imag, *, stride=STRIDE, time_avg=TIME_AVG,
                   time_avg_stride=TIME_AVG_STRIDE, is_log=IS_LOG):
    """Pure-JAX reference mirroring the PyTorch forward."""
    B, _, Lx = x.shape
    C, K = k_real.shape
    pad = K // 2
    xp = jnp.pad(x[:, 0, :], ((0, 0), (pad, pad)), mode="wrap")
    T1 = (Lx + 2 * pad - K) // stride + 1
    idx = jnp.arange(T1)[:, None] * stride + jnp.arange(K)[None, :]
    frames = xp[:, idx]                                                  # (B, T1, K)
    re = jnp.einsum("btk,ck->bct", frames, k_real)
    im = jnp.einsum("btk,ck->bct", frames, k_imag)
    power = re ** 2 + im ** 2                                            # (B, C, T1)
    T2 = (T1 - time_avg) // time_avg_stride + 1
    out = jnp.stack(
        [power[:, :, t * time_avg_stride: t * time_avg_stride + time_avg].sum(-1)
         for t in range(T2)],
        axis=-1,
    )
    if is_log:
        out = jnp.log10(jnp.maximum(out, LOG_EPS))
    return out


if __name__ == "__main__":
    key = jax.random.PRNGKey(0)
    x = jax.random.normal(key, (2, 1, L), dtype=jnp.float32)             # (B, 1, L)
    k_real, k_imag = make_gabor_kernels(NUM_CHANNELS, KERNEL_SIZE, FS)

    # Fused filterbank weight, built once outside the per-call jitted path (review item).
    w = jnp.concatenate([k_real, k_imag], axis=0).astype(jnp.float32)    # (2C, K)

    out = isac_mel_spectrogram(x, w)
    out = jax.block_until_ready(out)

    ref = jax.block_until_ready(isac_reference(x, k_real, k_imag))
    assert out.shape == ref.shape, (out.shape, ref.shape)
    assert jnp.allclose(out, ref, rtol=2e-3, atol=1e-3), float(
        jnp.max(jnp.abs(out - ref)))

    # TODO(synk): ISACgram / plot_response are matplotlib visualization helpers,
    # not kernel work — intentionally not implemented.
    print("KERNEL_OK")
</pallas_src>

<mosaic_0001>
module attributes {stable_mosaic.version = 11 : i64} {
  func.func @_isac_kernel(%arg0: memref<2x8x36xf32, #tpu.memory_space<vmem>>, %arg1: memref<32x32xf32, #tpu.memory_space<vmem>>, %arg2: memref<2x16x15xf32, #tpu.memory_space<vmem>>) attributes {dimension_semantics = [], scalar_prefetch = 0 : i64, scratch_operands = 0 : i64, tpu.core_type = #tpu.core_type<tc>} {
    %c0 = arith.constant 0 : index
    %c0_0 = arith.constant 0 : index
    %c0_1 = arith.constant 0 : index
    %0 = vector.load %arg0[%c0, %c0_0, %c0_1] : memref<2x8x36xf32, #tpu.memory_space<vmem>>, vector<2x8x36xf32>
    %1 = vector.extract_strided_slice %0 {offsets = [0, 0, 0], sizes = [1, 8, 33], strides = [1, 1, 1]} : vector<2x8x36xf32> to vector<1x8x33xf32>
    %2 = vector.shape_cast %1 : vector<1x8x33xf32> to vector<8x33xf32>
    %3 = vector.extract_strided_slice %0 {offsets = [1, 0, 0], sizes = [1, 8, 33], strides = [1, 1, 1]} : vector<2x8x36xf32> to vector<1x8x33xf32>
    %4 = vector.shape_cast %3 : vector<1x8x33xf32> to vector<8x33xf32>
    %5 = tpu.concatenate %2, %4 in 1 : vector<8x33xf32>, vector<8x33xf32> -> vector<8x66xf32>
    %6 = vector.extract_strided_slice %0 {offsets = [0, 0, 1], sizes = [1, 8, 33], strides = [1, 1, 1]} : vector<2x8x36xf32> to vector<1x8x33xf32>
    %7 = vector.shape_cast %6 : vector<1x8x33xf32> to vector<8x33xf32>
    %8 = vector.extract_strided_slice %0 {offsets = [1, 0, 1], sizes = [1, 8, 33], strides = [1, 1, 1]} : vector<2x8x36xf32> to vector<1x8x33xf32>
    %9 = vector.shape_cast %8 : vector<1x8x33xf32> to vector<8x33xf32>
    %10 = tpu.concatenate %7, %9 in 1 : vector<8x33xf32>, vector<8x33xf32> -> vector<8x66xf32>
    %11 = vector.extract_strided_slice %0 {offsets = [0, 0, 2], sizes = [1, 8, 33], strides = [1, 1, 1]} : vector<2x8x36xf32> to vector<1x8x33xf32>
    %12 = vector.shape_cast %11 : vector<1x8x33xf32> to vector<8x33xf32>
    %13 = vector.extract_strided_slice %0 {offsets = [1, 0, 2], sizes = [1, 8, 33], strides = [1, 1, 1]} : vector<2x8x36xf32> to vector<1x8x33xf32>
    %14 = vector.shape_cast %13 : vector<1x8x33xf32> to vector<8x33xf32>
    %15 = tpu.concatenate %12, %14 in 1 : vector<8x33xf32>, vector<8x33xf32> -> vector<8x66xf32>
    %16 = vector.extract_strided_slice %0 {offsets = [0, 0, 3], sizes = [1, 8, 33], strides = [1, 1, 1]} : vector<2x8x36xf32> to vector<1x8x33xf32>
    %17 = vector.shape_cast %16 : vector<1x8x33xf32> to vector<8x33xf32>
    %18 = vector.extract_strided_slice %0 {offsets = [1, 0, 3], sizes = [1, 8, 33], strides = [1, 1, 1]} : vector<2x8x36xf32> to vector<1x8x33xf32>
    %19 = vector.shape_cast %18 : vector<1x8x33xf32> to vector<8x33xf32>
    %20 = tpu.concatenate %17, %19 in 1 : vector<8x33xf32>, vector<8x33xf32> -> vector<8x66xf32>
    %21 = tpu.concatenate %5, %10, %15, %20 in 0 : vector<8x66xf32>, vector<8x66xf32>, vector<8x66xf32>, vector<8x66xf32> -> vector<32x66xf32>
    %c0_2 = arith.constant 0 : index
    %c0_3 = arith.constant 0 : index
    %22 = vector.load %arg1[%c0_2, %c0_3] : memref<32x32xf32, #tpu.memory_space<vmem>>, vector<32x32xf32>
    %cst = arith.constant dense<0.000000e+00> : vector<32x66xf32>
    %23 = tpu.matmul %22, %21, %cst {dimension_numbers = #tpu.dot_dimension_numbers<[1], [0], [0], [1], [0, 0, 1, 1], [], []>} : vector<32x32xf32>, vector<32x66xf32>, vector<32x66xf32> -> vector<32x66xf32>
    %24 = vector.extract_strided_slice %23 {offsets = [0, 0], sizes = [16, 66], strides = [1, 1]} : vector<32x66xf32> to vector<16x66xf32>
    %25 = vector.extract_strided_slice %23 {offsets = [16, 0], sizes = [16, 66], strides = [1, 1]} : vector<32x66xf32> to vector<16x66xf32>
    %26 = arith.mulf %24, %24 : vector<16x66xf32>
    %27 = arith.mulf %25, %25 : vector<16x66xf32>
    %28 = arith.addf %26, %27 : vector<16x66xf32>
    %29 = tpu.iota {dimensions = array<i32: 0>} : vector<33x15xi32>
    %30 = tpu.iota {dimensions = array<i32: 1>} : vector<33x15xi32>
    %c2_i32 = arith.constant 2 : i32
    %31 = vector.broadcast %c2_i32 : i32 to vector<33x15xi32>
    %32 = arith.muli %30, %31 : vector<33x15xi32>
    %33 = arith.cmpi sge, %29, %32 : vector<33x15xi32>
    %c4_i32 = arith.constant 4 : i32
    %34 = vector.broadcast %c4_i32 : i32 to vector<33x15xi32>
    %35 = arith.addi %32, %34 : vector<33x15xi32>
    %36 = arith.cmpi slt, %29, %35 : vector<33x15xi32>
    %37 = arith.andi %33, %36 : vector<33x15xi1>
    %38 = arith.extui %37 : vector<33x15xi1> to vector<33x15xi32>
    %39 = arith.sitofp %38 : vector<33x15xi32> to vector<33x15xf32>
    %40 = vector.extract_strided_slice %28 {offsets = [0, 0], sizes = [16, 33], strides = [1, 1]} : vector<16x66xf32> to vector<16x33xf32>
    %cst_4 = arith.constant dense<0.000000e+00> : vector<16x15xf32>
    %41 = tpu.matmul %40, %39, %cst_4 {dimension_numbers = #tpu.dot_dimension_numbers<[1], [0], [0], [1], [0, 0, 1, 1], [], []>} : vector<16x33xf32>, vector<33x15xf32>, vector<16x15xf32> -> vector<16x15xf32>
    %c0_5 = arith.constant 0 : index
    %c0_6 = arith.constant 0 : index
    %c0_7 = arith.constant 0 : index
    %42 = vector.load %arg2[%c0_5, %c0_6, %c0_7] : memref<2x16x15xf32, #tpu.memory_space<vmem>>, vector<1x16x15xf32>
    %43 = vector.shape_cast %42 : vector<1x16x15xf32> to vector<16x15xf32>
    %44 = vector.shape_cast %41 : vector<16x15xf32> to vector<1x16x15xf32>
    tpu.vector_store %arg2[%c0_5, %c0_6, %c0_7], %44 {strides = array<i32>} : memref<2x16x15xf32, #tpu.memory_space<vmem>>, vector<1x16x15xf32>,
    %45 = vector.extract_strided_slice %28 {offsets = [0, 33], sizes = [16, 33], strides = [1, 1]} : vector<16x66xf32> to vector<16x33xf32>
    %cst_8 = arith.constant dense<0.000000e+00> : vector<16x15xf32>
    %46 = tpu.matmul %45, %39, %cst_8 {dimension_numbers = #tpu.dot_dimension_numbers<[1], [0], [0], [1], [0, 0, 1, 1], [], []>} : vector<16x33xf32>, vector<33x15xf32>, vector<16x15xf32> -> vector<16x15xf32>
    %c1 = arith.constant 1 : index
    %c0_9 = arith.constant 0 : index
    %c0_10 = arith.constant 0 : index
    %47 = vector.load %arg2[%c1, %c0_9, %c0_10] : memref<2x16x15xf32, #tpu.memory_space<vmem>>, vector<1x16x15xf32>
    %48 = vector.shape_cast %47 : vector<1x16x15xf32> to vector<16x15xf32>
    %49 = vector.shape_cast %46 : vector<16x15xf32> to vector<1x16x15xf32>
    tpu.vector_store %arg2[%c1, %c0_9, %c0_10], %49 {strides = array<i32>} : memref<2x16x15xf32, #tpu.memory_space<vmem>>, vector<1x16x15xf32>,
    return
  }
}

</mosaic_0001>

<llo_original>
// kernel: isac_mel_spectrogram.1
$region0: #{isac_mel_spectrogram.1}
  #allocation0 [shape = 'u32[]', space=smem, size = 0x4, offset = 0x4, fixed_abs, tag = 'smem constant byte address 0x4 - core index']
  #allocation1 [shape = 'u32[144,128]{1,0:T(1,128)}', space=vmem, size = 0x12000, scoped, tag = 'internal scratch']
  %s0 = inlined_call_operand.vmem [shape: f32[2,8,36], index: 0, kind: input, shape index: {}]
  %s1 = inlined_call_operand.vmem [shape: f32[32,32], index: 1, kind: input, shape index: {}]
  %s2 = inlined_call_operand.vmem [shape: f32[2,16,15], index: 2, kind: output, shape index: {}]
  %s3 = sld [smem:[#allocation0]]
  $region18: #{isac_mel_spectrogram.1} parent=0
    _
  %s5 = ssub.s32 1, %s3
  %s6 = scalar_select 0, %s5, %s3
  // Predicated region
  $region2: #{isac_mel_spectrogram.1} parent=0 // pred_check
    _
  $region3: #{isac_mel_spectrogram.1} parent=0 // pred_check_branch
    %8 = sbr.rel (0) target = $region5
  $region4: #{isac_mel_spectrogram.1} parent=0 // pred_region
    _
  $region5: #{isac_mel_spectrogram.1} parent=0 // pred_fallthru
    _
  // Predicated region
  $region6: #{isac_mel_spectrogram.1} parent=0 // pred_check
    _
  $region7: #{isac_mel_spectrogram.1} parent=0 // pred_check_branch
    %10 = sbr.rel (0) target = $region9
  $region8: #{isac_mel_spectrogram.1} parent=0 // pred_region
    _
  $region9: #{isac_mel_spectrogram.1} parent=0 // pred_fallthru
    _
  %v11 = vld [vmem:[%s0] sm:$0xff]
  %v12 = vld [vmem:[%s0 + $0x8] sm:$0xff]
  %14 = vrot.lane.b32.xlu0 %v12, 33
  %v15 = vpop.permute.xlu0 %14
  %vm17 = vcmask 269312
  %v18 = vsel %vm17, %v11, %v15
  %20 = vrot.lane.b32.xlu0 %v11, 127
  %v21 = vpop.permute.xlu0 %20
  %23 = vrot.lane.b32.xlu0 %v12, 32
  %v24 = vpop.permute.xlu0 %23
  %v26 = vsel %vm17, %v21, %v24
  %27 = vrot.lane.b32.xlu0 %v11, 126
  %v28 = vpop.permute.xlu0 %27
  %30 = vrot.lane.b32.xlu0 %v12, 31
  %v31 = vpop.permute.xlu0 %30
  %v33 = vsel %vm17, %v28, %v31
  %34 = vrot.lane.b32.xlu0 %v11, 125
  %v35 = vpop.permute.xlu0 %34
  %37 = vrot.lane.b32.xlu0 %v12, 30
  %v38 = vpop.permute.xlu0 %37
  %v40 = vsel %vm17, %v35, %v38
  %v41 = vld [vmem:[%s1] sm:$0xff]
  %v42 = vld [vmem:[%s1 + $0x8] sm:$0xff]
  %v43 = vld [vmem:[%s1 + $0x10] sm:$0xff]
  %v44 = vld [vmem:[%s1 + $0x18] sm:$0xff]
  %vm45 = vcmask 261120
  %v47 = vsel %vm45, %v41, 0
  %v50 = vsel %vm45, %v42, 0
  %v53 = vsel %vm45, %v43, 0
  %v56 = vsel %vm45, %v44, 0
  %58 = vmatprep.subr.mxu0 0.0
  %59 = vmatpush1.msra.mxu0 %v18
  %60 = vmatprep.subr.mxu0 0.0
  %61 = vmatpush1.msra.mxu0 %v26
  %62 = vmatprep.subr.mxu0 0.0
  %63 = vmatpush1.msra.mxu0 %v33
  %64 = vmatprep.subr.mxu0 0.0
  %65 = vmatpush1.msra.mxu0 %v40
  %66 = vmatprep.subr.mxu0 0.0
  %67 = vmatpush1.msra.mxu0 0.0
  %68 = vmatprep.subr.mxu0 0.0
  %69 = vmatpush1.msra.mxu0 0.0
  %70 = vmatprep.subr.mxu0 0.0
  %71 = vmatpush1.msra.mxu0 0.0
  %72 = vmatprep.subr.mxu0 0.0
  %73 = vmatpush1.msra.mxu0 0.0
  %74 = vmatprep.subr.mxu0 0.0
  %75 = vmatpush1.msra.mxu0 0.0
  %76 = vmatprep.subr.mxu0 0.0
  %77 = vmatpush1.msra.mxu0 0.0
  %78 = vmatprep.subr.mxu0 0.0
  %79 = vmatpush1.msra.mxu0 0.0
  %80 = vmatprep.subr.mxu0 0.0
  %81 = vmatpush1.msra.mxu0 0.0
  %82 = vmatprep.subr.mxu0 0.0
  %83 = vmatpush1.msra.mxu0 0.0
  %84 = vmatprep.subr.mxu0 0.0
  %85 = vmatpush1.msra.mxu0 0.0
  %86 = vmatprep.subr.mxu0 0.0
  %87 = vmatpush1.msra.mxu0 0.0
  %88 = vmatprep.subr.mxu0 0.0
  %89 = vmatpush1.msra.mxu0 0.0
  %90 = vmatprep.subr.mxu0 0.0
  %91 = vmatpush1.msra.mxu0 0.0
  %92 = vmatprep.subr.mxu0 0.0
  %93 = vmatpush1.msra.mxu0 0.0
  %94 = vmatprep.subr.mxu0 0.0
  %95 = vmatpush1.msra.mxu0 0.0
  %96 = vmatprep.subr.mxu0 0.0
  %97 = vmatpush1.msra.mxu0 0.0
  %98 = vmatprep.subr.mxu0 0.0
  %99 = vmatpush1.msra.mxu0 0.0
  %100 = vmatprep.subr.mxu0 0.0
  %101 = vmatpush1.msra.mxu0 0.0
  %102 = vmatprep.subr.mxu0 0.0
  %103 = vmatpush1.msra.mxu0 0.0
  %104 = vmatprep.subr.mxu0 0.0
  %105 = vmatpush1.msra.mxu0 0.0
  %106 = vmatprep.subr.mxu0 0.0
  %107 = vmatpush1.msra.mxu0 0.0
  %108 = vmatprep.subr.mxu0 0.0
  %109 = vmatpush1.msra.mxu0 0.0
  %110 = vmatprep.subr.mxu0 0.0
  %111 = vmatpush1.msra.mxu0 0.0
  %112 = vmatprep.subr.mxu0 0.0
  %113 = vmatpush1.msra.mxu0 0.0
  %114 = vmatprep.subr.mxu0 0.0
  %115 = vmatpush1.msra.mxu0 0.0
  %116 = vmatprep.subr.mxu0 0.0
  %117 = vmatpush1.msra.mxu0 0.0
  %118 = vmatprep.subr.mxu0 0.0
  %119 = vmatpush1.msra.mxu0 0.0
  %120 = vmatprep.subr.mxu0 0.0
  %121 = vmatpush1.msra.mxu0 0.0
  %122 = vmatprep.mubr.f32.mxu0 0.0
  %123 = vmatmul.mubr.f32.gmra.mrb[0].mxu0 %v47
  %v124 = vpop.f32.mrb[0].mxu0
  %v125 = vadd.f32 0.0, %v124
  %v126 = vpop.f32.mrb[0].mxu0
  %127 = vmatprep.mubr.f32.mxu0 0.0
  %128 = vmatmul.mubr.f32.gmra.mrb[0].mxu0 %v50
  %v129 = vpop.f32.mrb[0].mxu0
  %v130 = vadd.f32 0.0, %v129
  %v131 = vpop.f32.mrb[0].mxu0
  %132 = vmatprep.mubr.f32.mxu0 0.0
  %133 = vmatmul.mubr.f32.gmra.mrb[0].mxu0 %v53
  %v134 = vpop.f32.mrb[0].mxu0
  %v135 = vadd.f32 0.0, %v134
  %v136 = vpop.f32.mrb[0].mxu0
  %137 = vmatprep.mubr.f32.mxu0 0.0
  %138 = vmatmul.mubr.f32.gmra.mrb[0].mxu0 %v56
  %v139 = vpop.f32.mrb[0].mxu0
  %v140 = vadd.f32 0.0, %v139
  %v141 = vpop.f32.mrb[0].mxu0
  %142 = vdwg.mxu0
  %v143 = vmul.f32 %v125, %v125
  %v144 = vmul.f32 %v130, %v130
  %v145 = vmul.f32 %v135, %v135
  %v146 = vmul.f32 %v140, %v140
  %v147 = vadd.f32 %v143, %v145
  %v148 = vadd.f32 %v144, %v146
  %v149 = vlaneseq
  %v150 = vshrl.u32 %v149, 7
  %v151 = vadd.s32 %v150, 8
  %v152 = vadd.s32 %v150, 16
  %v153 = vadd.s32 %v150, 24
  %v154 = vadd.s32 %v150, 32
  %v155 = vlaneseq
  %v156 = vand.u32 %v155, 127
  %v157 = vmul.u32 %v156, 2
  %vm158 = vcmp.ge.s32.totalorder %v150, %v157
  %vm159 = vcmp.ge.s32.totalorder %v151, %v157
  %vm160 = vcmp.ge.s32.totalorder %v152, %v157
  %vm161 = vcmp.ge.s32.totalorder %v153, %v157
  %vm162 = vcmp.ge.s32.totalorder %v154, %v157
  %v163 = vadd.s32 %v157, 4
  %vm164 = vcmp.lt.s32.totalorder %v150, %v163
  %vm165 = vcmp.lt.s32.totalorder %v151, %v163
  %vm166 = vcmp.lt.s32.totalorder %v152, %v163
  %vm167 = vcmp.lt.s32.totalorder %v153, %v163
  %vm168 = vcmp.lt.s32.totalorder %v154, %v163
  %vm169 = vmand %vm158, %vm164
  %vm170 = vmand %vm159, %vm165
  %vm171 = vmand %vm160, %vm166
  %vm172 = vmand %vm161, %vm167
  %vm173 = vmand %vm162, %vm168
  %v174 = vsel %vm169, 1, 0
  %v175 = vsel %vm170, 1, 0
  %v176 = vsel %vm171, 1, 0
  %v177 = vsel %vm172, 1, 0
  %v178 = vsel %vm173, 1, 0
  %v179 = vcvt.s32.f32 %v174
  %v180 = vcvt.s32.f32 %v175
  %v181 = vcvt.s32.f32 %v176
  %v182 = vcvt.s32.f32 %v177
  %v183 = vcvt.s32.f32 %v178
  %v185 = vsel %vm17, %v147, 0
  %v188 = vsel %vm17, %v148, 0
  %vm190 = vcmask 1040384
  %v192 = vsel %vm190, %v183, 0
  %194 = vmatprep.subr.mxu0 0.0
  %195 = vmatpush1.msra.mxu0 %v179
  %196 = vmatprep.subr.mxu0 0.0
  %197 = vmatpush1.msra.mxu0 %v180
  %198 = vmatprep.subr.mxu0 0.0
  %199 = vmatpush1.msra.mxu0 %v181
  %200 = vmatprep.subr.mxu0 0.0
  %201 = vmatpush1.msra.mxu0 %v182
  %202 = vmatprep.subr.mxu0 0.0
  %203 = vmatpush1.msra.mxu0 %v192
  %204 = vmatprep.subr.mxu0 0.0
  %205 = vmatpush1.msra.mxu0 0.0
  %206 = vmatprep.subr.mxu0 0.0
  %207 = vmatpush1.msra.mxu0 0.0
  %208 = vmatprep.subr.mxu0 0.0
  %209 = vmatpush1.msra.mxu0 0.0
  %210 = vmatprep.subr.mxu0 0.0
  %211 = vmatpush1.msra.mxu0 0.0
  %212 = vmatprep.subr.mxu0 0.0
  %213 = vmatpush1.msra.mxu0 0.0
  %214 = vmatprep.subr.mxu0 0.0
  %215 = vmatpush1.msra.mxu0 0.0
  %216 = vmatprep.subr.mxu0 0.0
  %217 = vmatpush1.msra.mxu0 0.0
  %218 = vmatprep.subr.mxu0 0.0
  %219 = vmatpush1.msra.mxu0 0.0
  %220 = vmatprep.subr.mxu0 0.0
  %221 = vmatpush1.msra.mxu0 0.0
  %222 = vmatprep.subr.mxu0 0.0
  %223 = vmatpush1.msra.mxu0 0.0
  %224 = vmatprep.subr.mxu0 0.0
  %225 = vmatpush1.msra.mxu0 0.0
  %226 = vmatprep.subr.mxu0 0.0
  %227 = vmatpush1.msra.mxu0 0.0
  %228 = vmatprep.subr.mxu0 0.0
  %229 = vmatpush1.msra.mxu0 0.0
  %230 = vmatprep.subr.mxu0 0.0
  %231 = vmatpush1.msra.mxu0 0.0
  %232 = vmatprep.subr.mxu0 0.0
  %233 = vmatpush1.msra.mxu0 0.0
  %234 = vmatprep.subr.mxu0 0.0
  %235 = vmatpush1.msra.mxu0 0.0
  %236 = vmatprep.subr.mxu0 0.0
  %237 = vmatpush1.msra.mxu0 0.0
  %238 = vmatprep.subr.mxu0 0.0
  %239 = vmatpush1.msra.mxu0 0.0
  %240 = vmatprep.subr.mxu0 0.0
  %241 = vmatpush1.msra.mxu0 0.0
  %242 = vmatprep.subr.mxu0 0.0
  %243 = vmatpush1.msra.mxu0 0.0
  %244 = vmatprep.subr.mxu0 0.0
  %245 = vmatpush1.msra.mxu0 0.0
  %246 = vmatprep.subr.mxu0 0.0
  %247 = vmatpush1.msra.mxu0 0.0
  %248 = vmatprep.subr.mxu0 0.0
  %249 = vmatpush1.msra.mxu0 0.0
  %250 = vmatprep.subr.mxu0 0.0
  %251 = vmatpush1.msra.mxu0 0.0
  %252 = vmatprep.subr.mxu0 0.0
  %253 = vmatpush1.msra.mxu0 0.0
  %254 = vmatprep.subr.mxu0 0.0
  %255 = vmatpush1.msra.mxu0 0.0
  %256 = vmatprep.subr.mxu0 0.0
  %257 = vmatpush1.msra.mxu0 0.0
  %258 = vmatprep.mubr.f32.mxu0 0.0
  %259 = vmatmul.mubr.f32.gmra.mrb[0].mxu0 %v185
  %v260 = vpop.f32.mrb[0].mxu0
  %v261 = vadd.f32 0.0, %v260
  %v262 = vpop.f32.mrb[0].mxu0
  %263 = vmatprep.mubr.f32.mxu0 0.0
  %264 = vmatmul.mubr.f32.gmra.mrb[0].mxu0 %v188
  %v265 = vpop.f32.mrb[0].mxu0
  %v266 = vadd.f32 0.0, %v265
  %v267 = vpop.f32.mrb[0].mxu0
  %268 = vdwg.mxu0
  %vm269 = vcmask 121856
  %270 = vst.msk [vmem:[%s2] sm:$0xff] %vm269, %v261
  %271 = vst.msk [vmem:[%s2 + $0x8] sm:$0xff] %vm269, %v266
  %272 = vrot.lane.b32.xlu0 %v147, 95
  %v273 = vpop.permute.xlu0 %272
  %274 = vrot.lane.b32.xlu0 %v148, 95
  %v275 = vpop.permute.xlu0 %274
  %v276 = vsel %vm17, %v273, 0
  %v278 = vsel %vm17, %v275, 0
  %280 = vmatprep.subr.mxu0 0.0
  %281 = vmatpush1.msra.mxu0 %v179
  %282 = vmatprep.subr.mxu0 0.0
  %283 = vmatpush1.msra.mxu0 %v180
  %284 = vmatprep.subr.mxu0 0.0
  %285 = vmatpush1.msra.mxu0 %v181
  %286 = vmatprep.subr.mxu0 0.0
  %287 = vmatpush1.msra.mxu0 %v182
  %288 = vmatprep.subr.mxu0 0.0
  %289 = vmatpush1.msra.mxu0 %v192
  %290 = vmatprep.subr.mxu0 0.0
  %291 = vmatpush1.msra.mxu0 0.0
  %292 = vmatprep.subr.mxu0 0.0
  %293 = vmatpush1.msra.mxu0 0.0
  %294 = vmatprep.subr.mxu0 0.0
  %295 = vmatpush1.msra.mxu0 0.0
  %296 = vmatprep.subr.mxu0 0.0
  %297 = vmatpush1.msra.mxu0 0.0
  %298 = vmatprep.subr.mxu0 0.0
  %299 = vmatpush1.msra.mxu0 0.0
  %300 = vmatprep.subr.mxu0 0.0
  %301 = vmatpush1.msra.mxu0 0.0
  %302 = vmatprep.subr.mxu0 0.0
  %303 = vmatpush1.msra.mxu0 0.0
  %304 = vmatprep.subr.mxu0 0.0
  %305 = vmatpush1.msra.mxu0 0.0
  %306 = vmatprep.subr.mxu0 0.0
  %307 = vmatpush1.msra.mxu0 0.0
  %308 = vmatprep.subr.mxu0 0.0
  %309 = vmatpush1.msra.mxu0 0.0
  %310 = vmatprep.subr.mxu0 0.0
  %311 = vmatpush1.msra.mxu0 0.0
  %312 = vmatprep.subr.mxu0 0.0
  %313 = vmatpush1.msra.mxu0 0.0
  %314 = vmatprep.subr.mxu0 0.0
  %315 = vmatpush1.msra.mxu0 0.0
  %316 = vmatprep.subr.mxu0 0.0
  %317 = vmatpush1.msra.mxu0 0.0
  %318 = vmatprep.subr.mxu0 0.0
  %319 = vmatpush1.msra.mxu0 0.0
  %320 = vmatprep.subr.mxu0 0.0
  %321 = vmatpush1.msra.mxu0 0.0
  %322 = vmatprep.subr.mxu0 0.0
  %323 = vmatpush1.msra.mxu0 0.0
  %324 = vmatprep.subr.mxu0 0.0
  %325 = vmatpush1.msra.mxu0 0.0
  %326 = vmatprep.subr.mxu0 0.0
  %327 = vmatpush1.msra.mxu0 0.0
  %328 = vmatprep.subr.mxu0 0.0
  %329 = vmatpush1.msra.mxu0 0.0
  %330 = vmatprep.subr.mxu0 0.0
  %331 = vmatpush1.msra.mxu0 0.0
  %332 = vmatprep.subr.mxu0 0.0
  %333 = vmatpush1.msra.mxu0 0.0
  %334 = vmatprep.subr.mxu0 0.0
  %335 = vmatpush1.msra.mxu0 0.0
  %336 = vmatprep.subr.mxu0 0.0
  %337 = vmatpush1.msra.mxu0 0.0
  %338 = vmatprep.subr.mxu0 0.0
  %339 = vmatpush1.msra.mxu0 0.0
  %340 = vmatprep.subr.mxu0 0.0
  %341 = vmatpush1.msra.mxu0 0.0
  %342 = vmatprep.subr.mxu0 0.0
  %343 = vmatpush1.msra.mxu0 0.0
  %344 = vmatprep.mubr.f32.mxu0 0.0
  %345 = vmatmul.mubr.f32.gmra.mrb[0].mxu0 %v276
  %v346 = vpop.f32.mrb[0].mxu0
  %v347 = vadd.f32 0.0, %v346
  %v348 = vpop.f32.mrb[0].mxu0
  %349 = vmatprep.mubr.f32.mxu0 0.0
  %350 = vmatmul.mubr.f32.gmra.mrb[0].mxu0 %v278
  %v351 = vpop.f32.mrb[0].mxu0
  %v352 = vadd.f32 0.0, %v351
  %v353 = vpop.f32.mrb[0].mxu0
  %354 = vdwg.mxu0
  %s355 = scalar_lea.vmem %s2, 16
  %356 = vst.msk [vmem:[%s355] sm:$0xff] %vm269, %v347
  %357 = vst.msk [vmem:[%s355 + $0x8] sm:$0xff] %vm269, %v352
  // Predicated region
  $region10: #{isac_mel_spectrogram.1} parent=0 // pred_check
    _
  $region11: #{isac_mel_spectrogram.1} parent=0 // pred_check_branch
    %359 = sbr.rel (0) target = $region13
  $region12: #{isac_mel_spectrogram.1} parent=0 // pred_region
    _
  $region13: #{isac_mel_spectrogram.1} parent=0 // pred_fallthru
    _
  // Predicated region
  $region14: #{isac_mel_spectrogram.1} parent=0 // pred_check
    _
  $region15: #{isac_mel_spectrogram.1} parent=0 // pred_check_branch
    %361 = sbr.rel (0) target = $region17
  $region16: #{isac_mel_spectrogram.1} parent=0 // pred_region
    _
  $region17: #{isac_mel_spectrogram.1} parent=0 // pred_fallthru
    _

</llo_original>
